<compile_context>
chip_gen: v7x
topology: tpu7x:2x2x1
jax: 0.10.0
libtpu: 0.0.40
codegen_flags: <defaults>
</compile_context>

<pallas_src>
import math
import functools

import jax
import jax.numpy as jnp
from jax import lax
from jax.experimental import pallas as pl
from jax.experimental.pallas import tpu as pltpu


def _round_up(x, m):
    return ((x + m - 1) // m) * m


def _largest_divisor_tile(total, cap, align):
    """Largest multiple of `align` that divides `total` and is <= cap."""
    if total <= cap:
        return total
    t = (cap // align) * align
    while t >= align:
        if total % t == 0:
            return t
        t -= align
    return align  # `total` is a multiple of `align`, so this always divides.


def _gelu_exact(x):
    # erf formulation == torch.nn.functional.gelu == HF get_activation("gelu")
    return 0.5 * x * (1.0 + lax.erf(x * (1.0 / math.sqrt(2.0))))


def _apply_activation(x, activation):
    if activation == "gelu":
        return _gelu_exact(x)
    if activation == "tanh":
        return jnp.tanh(x)
    if activation is None or activation == "none":
        return x
    raise NotImplementedError(f"activation {activation!r} not supported")


def _extract_summary(hidden_states, summary_type, cls_index):
    B, S, H = hidden_states.shape
    if summary_type == "first":
        return hidden_states[:, 0]
    if summary_type == "last":
        return hidden_states[:, -1]
    if summary_type == "mean":
        return jnp.mean(hidden_states, axis=1)
    if summary_type == "cls_index":
        if cls_index is None:
            idx = jnp.full((B,), S - 1, dtype=jnp.int32)
        else:
            idx = cls_index.astype(jnp.int32).reshape(B)
        gathered = jnp.take_along_axis(hidden_states, idx[:, None, None], axis=1)
        return gathered[:, 0]
    # TODO(synk): summary_type == "attn" raises NotImplementedError in the reference module too.
    raise NotImplementedError(f"summary_type {summary_type!r} not supported")


def _proj_act_kernel(x_ref, w_ref, b_ref, o_ref, *, activation):
    # x_ref: (tm, H)  w_ref: (H, tn)  b_ref: (1, tn) f32  o_ref: (tm, tn)
    acc = jnp.dot(x_ref[...], w_ref[...], preferred_element_type=jnp.float32)
    acc = acc + b_ref[...]                       # bias kept/added in f32
    o_ref[...] = _apply_activation(acc, activation).astype(o_ref.dtype)


@functools.partial(
    jax.jit,
    static_argnames=("summary_type", "activation", "row_tile", "col_tile",
                     "min_pallas_flops", "out_dtype"),
)
def electra_sequence_summary(
    hidden_states,            # [B, S, H]
    weight_t=None,            # pre-transposed nn.Linear weight: [H, num_classes]
                              #   (pre-cast to bf16 once at load time for bandwidth)
    bias=None,                # [num_classes]
    cls_index=None,           # optional [B] int indices (summary_type == "cls_index")
    *,
    summary_type="first",     # ElectraConfig default
    activation="gelu",        # ElectraConfig default summary_activation
    row_tile=256,             # max row (batch) tile
    col_tile=512,             # max output-feature tile (multiple of 128 lanes)
    min_pallas_flops=1 << 17, # below this, plain XLA dot is faster than launch+grid
    out_dtype=jnp.float32,    # torch f32 Linear returns f32 regardless of input dtype
):
    """Returns [B, num_classes] (or activation(x) if no projection weight is given)."""
    B, S, H = hidden_states.shape

    # (1) summary extraction + (2) first_dropout (identity at inference).
    # TODO(synk): training-mode dropout (summary_first/last_dropout) not implemented.
    x = _extract_summary(hidden_states, summary_type, cls_index)

    if weight_t is None:
        # summary_use_proj = False: self.summary is nn.Identity(); only activation applies.
        return _apply_activation(x, activation)

    C = weight_t.shape[1]
    if bias is None:
        bias = jnp.zeros((C,), jnp.float32)

    # Fast path: tiny heads (2-class classifiers, C < 128) are lane-sparse and
    # launch/grid-step overhead dominates -> XLA's fused dot is strictly faster.
    if C < 128 or C % 128 != 0 or 2 * B * H * C < min_pallas_flops:
        y = jnp.dot(x, weight_t, preferred_element_type=jnp.float32)
        y = y + bias.astype(jnp.float32)
        return _apply_activation(y, activation).astype(out_dtype)

    # Compute dtype follows the (pre-cast) weight; casting the tiny (B, H)
    # activation is cheap, the weight is never touched before the kernel.
    if x.dtype != weight_t.dtype:
        x = x.astype(weight_t.dtype)

    xi = jnp.dtype(x.dtype).itemsize
    wi = jnp.dtype(weight_t.dtype).itemsize
    oi = jnp.dtype(out_dtype).itemsize

    # Sublane packing: 8 rows/vreg for 4-byte dtypes, 16 for 2-byte (bf16).
    align = {4: 8, 2: 16, 1: 32}.get(xi, 8)
    Mp = _round_up(B, align)
    tm = _largest_divisor_tile(Mp, row_tile, align)   # no over-padding of rows

    # VMEM budget from the actual chip (v5e/v6e: 128 MiB, v7x: 64 MiB).
    try:
        vmem_cap = int(pltpu.get_tpu_info().vmem_capacity_bytes)
    except Exception:
        vmem_cap = 64 << 20
    budget = int(vmem_cap * 0.40)
    denom = 2 * H * wi + 2 * tm * oi + 2 * 4
    avail = budget - 2 * tm * H * xi
    max_tn = max(128, (avail // denom) // 128 * 128) if avail > denom * 128 else 128

    # tn: multiple of 128 that DIVIDES C (no weight padding ever), within the
    # VMEM budget; prefer >= 2 column blocks so both v7x TCs get weight halves.
    cands = [d for d in range(128, C + 1, 128)
             if C % d == 0 and d <= min(max_tn, col_tile)]
    if C >= 256:
        two = [d for d in cands if C // d >= 2]
        if two:
            cands = two
    tn = max(cands) if cands else 128
    n_row, n_col = Mp // tm, C // tn

    xk = jnp.pad(x, ((0, Mp - B), (0, 0))) if Mp != B else x
    bk = bias.reshape(1, C).astype(jnp.float32)

    # Loop order: the outer-indexed operand is fetched exactly once; put the
    # operand with the larger redundant re-stream on the outer axis.
    extra_cols_outer = (n_col - 1) * Mp * H * xi if n_row > 1 else 0
    extra_rows_outer = (n_row - 1) * H * C * wi if n_col > 1 else 0
    cols_outer = extra_cols_outer <= extra_rows_outer

    if cols_outer:
        grid = (n_col, n_row)
        x_spec = pl.BlockSpec((tm, H), lambda j, i: (i, 0))
        w_spec = pl.BlockSpec((H, tn), lambda j, i: (0, j))
        b_spec = pl.BlockSpec((1, tn), lambda j, i: (0, j))
        o_spec = pl.BlockSpec((tm, tn), lambda j, i: (i, j))
        x_reads, w_reads = (n_col if n_row > 1 else 1), 1
    else:
        grid = (n_row, n_col)
        x_spec = pl.BlockSpec((tm, H), lambda i, j: (i, 0))
        w_spec = pl.BlockSpec((H, tn), lambda i, j: (0, j))
        b_spec = pl.BlockSpec((1, tn), lambda i, j: (0, j))
        o_spec = pl.BlockSpec((tm, tn), lambda i, j: (i, j))
        x_reads, w_reads = 1, (n_row if n_col > 1 else 1)

    # Explicit VMEM limit from the double-buffered block footprint (+ headroom).
    footprint = 2 * (tm * H * xi + H * tn * wi + tm * tn * oi + tn * 4)
    vmem_limit = min(vmem_cap, max(int(footprint * 1.5) + (2 << 20), 16 << 20))

    cost = pl.CostEstimate(
        flops=2 * Mp * H * C,
        transcendentals=(Mp * C) if activation in ("gelu", "tanh") else 0,
        bytes_accessed=(x_reads * Mp * H * xi + w_reads * H * C * wi
                        + C * 4 + Mp * C * oi),
    )

    out = pl.pallas_call(
        functools.partial(_proj_act_kernel, activation=activation),
        out_shape=jax.ShapeDtypeStruct((Mp, C), out_dtype),
        grid_spec=pltpu.PrefetchScalarGridSpec(
            num_scalar_prefetch=0,
            grid=grid,
            in_specs=[x_spec, w_spec, b_spec],
            out_specs=o_spec,
        ),
        compiler_params=pltpu.CompilerParams(
            dimension_semantics=("parallel", "parallel"),
            vmem_limit_bytes=vmem_limit,
        ),
        cost_estimate=cost,
    )(xk, weight_t, bk)

    return out[:B] if Mp != B else out


def _reference(hidden_states, weight_t, bias, summary_type, activation, cls_index=None):
    x = _extract_summary(hidden_states, summary_type, cls_index)
    y = jnp.dot(x.astype(jnp.float32), weight_t.astype(jnp.float32),
                precision="highest") + bias.astype(jnp.float32)
    return _apply_activation(y, activation)


if __name__ == "__main__":
    # Electra-small-ish config: hidden_size=256, summary_type="first",
    # summary_use_proj=True (project to hidden_size), summary_activation="gelu";
    # dropouts are identity at inference.
    batch, seq, hidden_size = 2, 8, 256
    num_classes = hidden_size

    key = jax.random.PRNGKey(0)
    kx, kw, kb, kc = jax.random.split(key, 4)

    hidden_states = jax.random.normal(kx, (batch, seq, hidden_size), dtype=jnp.float32)
    # torch nn.Linear weight is [num_classes, hidden]; pass it pre-transposed [hidden, num_classes].
    weight_t = (jax.random.normal(kw, (hidden_size, num_classes), dtype=jnp.float32)
                * (1.0 / math.sqrt(hidden_size)))
    bias = jax.random.normal(kb, (num_classes,), dtype=jnp.float32) * 0.02
    cls_idx = jax.random.randint(kc, (batch,), 0, seq, dtype=jnp.int32)

    # Default Electra path: first-token summary + projection + exact GELU.
    # (Tolerance allows for MXU bf16-pass precision of the f32 matmul.)
    out = jax.block_until_ready(
        electra_sequence_summary(hidden_states, weight_t, bias,
                                 summary_type="first", activation="gelu"))
    ref = _reference(hidden_states, weight_t, bias, "first", "gelu")
    assert out.shape == (batch, num_classes)
    assert jnp.allclose(out, ref, atol=2e-2, rtol=2e-2), "mismatch (first/gelu)"

    # Other summary types share the same projection kernel.
    for st in ("last", "mean", "cls_index"):
        ci = cls_idx if st == "cls_index" else None
        o = jax.block_until_ready(
            electra_sequence_summary(hidden_states, weight_t, bias, ci,
                                     summary_type=st, activation="tanh"))
        r = _reference(hidden_states, weight_t, bias, st, "tanh", ci)
        assert o.shape == (batch, num_classes)
        assert jnp.allclose(o, r, atol=2e-2, rtol=2e-2), f"mismatch ({st}/tanh)"

    # Recommended deployment path: weight pre-cast to bf16 ONCE outside the jit
    # (halves the HBM weight stream that dominates this bandwidth-bound head).
    weight_bf16 = weight_t.astype(jnp.bfloat16)
    o16 = jax.block_until_ready(
        electra_sequence_summary(hidden_states, weight_bf16, bias,
                                 summary_type="first", activation="gelu"))
    assert jnp.allclose(o16, ref, atol=5e-2, rtol=5e-2), "mismatch (bf16 weight)"

    # Tiny classifier head (num_labels=2): takes the plain-JAX fast path.
    w2 = (jax.random.normal(kw, (hidden_size, 2), dtype=jnp.float32)
          * (1.0 / math.sqrt(hidden_size)))
    b2 = jnp.zeros((2,), jnp.float32)
    o2 = jax.block_until_ready(
        electra_sequence_summary(hidden_states, w2, b2,
                                 summary_type="first", activation="tanh"))
    r2 = _reference(hidden_states, w2, b2, "first", "tanh")
    assert o2.shape == (batch, 2)
    assert jnp.allclose(o2, r2, atol=2e-2, rtol=2e-2), "mismatch (tiny head fast path)"

    print("KERNEL_OK")
</pallas_src>

<mosaic_0001>
module attributes {stable_mosaic.version = 11 : i64} {
  func.func @_proj_act_kernel(%arg0: i32, %arg1: i32, %arg2: memref<8x256xf32, #tpu.memory_space<vmem>>, %arg3: memref<256x128xf32, #tpu.memory_space<vmem>>, %arg4: memref<1x128xf32, #tpu.memory_space<vmem>>, %arg5: memref<8x128xf32, #tpu.memory_space<vmem>>) attributes {dimension_semantics = [#tpu.dimension_semantics<parallel>, #tpu.dimension_semantics<parallel>], iteration_bounds = array<i64: 2, 1>, scalar_prefetch = 0 : i64, scratch_operands = 0 : i64, tpu.core_type = #tpu.core_type<tc>, window_params = [{transform_indices = @transform_0, window_bounds = array<i64: 8, 256>}, {transform_indices = @transform_1, window_bounds = array<i64: 256, 128>}, {transform_indices = @transform_2, window_bounds = array<i64: 1, 128>}, {transform_indices = @transform_3, window_bounds = array<i64: 8, 128>}]} {
    %c0 = arith.constant 0 : index
    %c0_0 = arith.constant 0 : index
    %0 = vector.load %arg2[%c0, %c0_0] : memref<8x256xf32, #tpu.memory_space<vmem>>, vector<8x256xf32>
    %c0_1 = arith.constant 0 : index
    %c0_2 = arith.constant 0 : index
    %1 = vector.load %arg3[%c0_1, %c0_2] : memref<256x128xf32, #tpu.memory_space<vmem>>, vector<256x128xf32>
    %cst = arith.constant dense<0.000000e+00> : vector<8x128xf32>
    %2 = tpu.matmul %0, %1, %cst {dimension_numbers = #tpu.dot_dimension_numbers<[1], [0], [0], [1], [0, 0, 1, 1], [], []>} : vector<8x256xf32>, vector<256x128xf32>, vector<8x128xf32> -> vector<8x128xf32>
    %c0_3 = arith.constant 0 : index
    %c0_4 = arith.constant 0 : index
    %3 = vector.load %arg4[%c0_3, %c0_4] : memref<1x128xf32, #tpu.memory_space<vmem>>, vector<1x128xf32>
    %4 = vector.broadcast %3 : vector<1x128xf32> to vector<8x128xf32>
    %5 = arith.addf %2, %4 : vector<8x128xf32>
    %cst_5 = arith.constant 5.000000e-01 : f32
    %6 = vector.broadcast %cst_5 : f32 to vector<8x128xf32>
    %7 = arith.mulf %6, %5 : vector<8x128xf32>
    %cst_6 = arith.constant 0.707106769 : f32
    %8 = vector.broadcast %cst_6 : f32 to vector<8x128xf32>
    %9 = arith.mulf %5, %8 : vector<8x128xf32>
    %10 = math.erf %9 : vector<8x128xf32>
    %cst_7 = arith.constant 1.000000e+00 : f32
    %11 = vector.broadcast %cst_7 : f32 to vector<8x128xf32>
    %12 = arith.addf %11, %10 : vector<8x128xf32>
    %13 = arith.mulf %7, %12 : vector<8x128xf32>
    %c0_8 = arith.constant 0 : index
    %c0_9 = arith.constant 0 : index
    %14 = vector.load %arg5[%c0_8, %c0_9] : memref<8x128xf32, #tpu.memory_space<vmem>>, vector<8x128xf32>
    tpu.vector_store %arg5[%c0_8, %c0_9], %13 {strides = array<i32>} : memref<8x128xf32, #tpu.memory_space<vmem>>, vector<8x128xf32>,
    return
  }
  func.func @transform_0(%arg0: i32, %arg1: i32) -> (i32, i32) {
    %c0_i32 = arith.constant 0 : i32
    %c0_i32_0 = arith.constant 0 : i32
    return %arg1, %c0_i32 : i32, i32
  }
  func.func @transform_1(%arg0: i32, %arg1: i32) -> (i32, i32) {
    %c0_i32 = arith.constant 0 : i32
    %c0_i32_0 = arith.constant 0 : i32
    return %c0_i32, %arg0 : i32, i32
  }
  func.func @transform_2(%arg0: i32, %arg1: i32) -> (i32, i32) {
    %c0_i32 = arith.constant 0 : i32
    %c0_i32_0 = arith.constant 0 : i32
    return %c0_i32, %arg0 : i32, i32
  }
  func.func @transform_3(%arg0: i32, %arg1: i32) -> (i32, i32) {
    %c0_i32 = arith.constant 0 : i32
    return %arg1, %arg0 : i32, i32
  }
}

</mosaic_0001>

<llo_original>
// kernel: electra_sequence_summary.1
$region0: #{electra_sequence_summary.1}
  #allocation0 [shape = 'u32[]', space=smem, size = 0x4, offset = 0x4, fixed_abs, tag = 'smem constant byte address 0x4 - core index']
  #allocation1 [shape = 'u32[144,128]{1,0:T(1,128)}', space=vmem, size = 0x12000, scoped, tag = 'internal scratch']
  %s0 = inlined_call_operand.vmem [shape: f32[8,256], index: 0, kind: input, shape index: {}]
  %s1 = inlined_call_operand.hbm [shape: f32[256,256], index: 1, kind: input, shape index: {}]
  %s2 = inlined_call_operand.vmem [shape: f32[1,256], index: 2, kind: input, shape index: {}]
  %s3 = inlined_call_operand.vmem [shape: f32[8,256], index: 3, kind: output, shape index: {}]
  %s4 = sld [smem:[#allocation0]]
  $region49: #{electra_sequence_summary.1} parent=0
    _
  %s6 = ssub.s32 1, %s4
  %s7 = scalar_select 0, %s6, %s4
  $region1: #{electra_sequence_summary.1} parent=0
    #allocation2 [shape = 'u8[262144]{0}', space=vmem, size = 0x40000, scoped, tag = 'input window, operand 1']
    #allocation3 [shape = 's32[2]{0}', space=sflag, size = 0x8, scoped, tag = 'scoped memory for electra_sequence_summary.1']
    %8 = vsyncpa [#allocation3], 0
    %s9 = scalar_lea.sflag [#allocation3], 1
    %10 = vsyncpa %s9, 0
    loop: start=0, step=1, limit=4
    $region2: #{electra_sequence_summary.1} parent=1 // loop_pre_header
      _
    $region3: #{electra_sequence_summary.1} parent=1 // loop_header
      %s12 = sphi 0, %s16
      %p13 = scmp.ge.s32.totalorder %s12, 4
      %s19 = sphi 0, %s31
      %s20 = sphi 0, %s27
      %s21 = sphi 0, %s19
      %s22 = sphi 0, %s20
      %s23 = sphi 0, %s21
      %s24 = sphi 0, %s22
      %s34 = sphi 0, %s36
      %s37 = sphi 0, %s34
      %s38 = sphi 0, %s37
      %s54 = sphi 0, %s38
      %s60 = sphi 0, %s62
      %s63 = sphi 0, %s60
      %s64 = sphi 0, %s63
      %s80 = sphi 0, %s64
      %s86 = sphi 0, %s88
      %s89 = sphi 0, %s86
      %s90 = sphi 0, %s89
      %s106 = sphi 0, %s90
      %s114 = sphi 0, %s116
      %s117 = sphi 0, %s114
      %s118 = sphi 0, %s117
      %s134 = sphi 0, %s118
    $region4: #{electra_sequence_summary.1} parent=1 // loop_header_branch
      %15 = sbr.rel (%p13) target = $region8
    $region5: #{electra_sequence_summary.1} parent=1 // loop_body
      %s17 = ssub.s32 %s12, 1
      %s18 = ssub.s32 %s12, 2
      %s25 = sadd.s32 1, %s20
      %p26 = scmp.ge.s32.totalorder %s25, 1
      %s27 = scalar_select %p26, 0, %s25
      %s28 = sadd.s32 1, %s19
      %s29 = scalar_select %p26, %s28, %s19
      %p30 = scmp.ge.s32.totalorder %s29, 2
      %s31 = scalar_select %p30, 0, %s29
      %s32 = ssub.s32 %s20, %s27
      %p33 = scmp.eq.s32.totalorder %s32, 0
      %s35 = sadd.s32 %s34, 1
      %s36 = scalar_select %p33, %s34, %s35
      %p39 = pneg %p33
      %p40 = scmp.eq.s32.totalorder %s12, 1
      %p41 = por %p39, %p40
      %p42 = scmp.ne.s32.totalorder %s34, %s37
      %p43 = scmp.eq.s32.totalorder %s12, 0
      %p44 = por %p42, %p43
      %p45 = scmp.ne.s32.totalorder %s34, %s37
      %p46 = scmp.eq.s32.totalorder %s17, 1
      %p47 = por %p45, %p46
      %p48 = scmp.ne.s32.totalorder %s37, %s38
      %p49 = scmp.eq.s32.totalorder %s17, 0
      %p50 = por %p48, %p49
      %p51 = scmp.ne.s32.totalorder %s37, %s38
      %p52 = scmp.eq.s32.totalorder %s18, 1
      %p53 = por %p51, %p52
      %p55 = scmp.ne.s32.totalorder %s38, %s54
      %p56 = scmp.eq.s32.totalorder %s18, 0
      %p57 = por %p55, %p56
      %s58 = ssub.s32 %s19, %s31
      %p59 = scmp.eq.s32.totalorder %s58, 0
      %s61 = sadd.s32 %s60, 1
      %s62 = scalar_select %p59, %s60, %s61
      %p65 = pneg %p59
      %p66 = scmp.eq.s32.totalorder %s12, 1
      %p67 = por %p65, %p66
      %p68 = scmp.ne.s32.totalorder %s60, %s63
      %p69 = scmp.eq.s32.totalorder %s12, 0
      %p70 = por %p68, %p69
      %p71 = scmp.ne.s32.totalorder %s60, %s63
      %p72 = scmp.eq.s32.totalorder %s17, 1
      %p73 = por %p71, %p72
      %p74 = scmp.ne.s32.totalorder %s63, %s64
      %p75 = scmp.eq.s32.totalorder %s17, 0
      %p76 = por %p74, %p75
      %p77 = scmp.ne.s32.totalorder %s63, %s64
      %p78 = scmp.eq.s32.totalorder %s18, 1
      %p79 = por %p77, %p78
      %p81 = scmp.ne.s32.totalorder %s64, %s80
      %p82 = scmp.eq.s32.totalorder %s18, 0
      %p83 = por %p81, %p82
      %s84 = ssub.s32 %s19, %s31
      %p85 = scmp.eq.s32.totalorder %s84, 0
      %s87 = sadd.s32 %s86, 1
      %s88 = scalar_select %p85, %s86, %s87
      %p91 = pneg %p85
      %p92 = scmp.eq.s32.totalorder %s12, 1
      %p93 = por %p91, %p92
      %p94 = scmp.ne.s32.totalorder %s86, %s89
      %p95 = scmp.eq.s32.totalorder %s12, 0
      %p96 = por %p94, %p95
      %p97 = scmp.ne.s32.totalorder %s86, %s89
      %p98 = scmp.eq.s32.totalorder %s17, 1
      %p99 = por %p97, %p98
      %p100 = scmp.ne.s32.totalorder %s89, %s90
      %p101 = scmp.eq.s32.totalorder %s17, 0
      %p102 = por %p100, %p101
      %p103 = scmp.ne.s32.totalorder %s89, %s90
      %p104 = scmp.eq.s32.totalorder %s18, 1
      %p105 = por %p103, %p104
      %p107 = scmp.ne.s32.totalorder %s90, %s106
      %p108 = scmp.eq.s32.totalorder %s18, 0
      %p109 = por %p107, %p108
      %s110 = ssub.s32 %s20, %s27
      %s111 = ssub.s32 %s19, %s31
      %s112 = sor.u32 %s110, %s111
      %p113 = scmp.eq.s32.totalorder %s112, 0
      %s115 = sadd.s32 %s114, 1
      %s116 = scalar_select %p113, %s114, %s115
      %p119 = pneg %p113
      %p120 = scmp.eq.s32.totalorder %s12, 1
      %p121 = por %p119, %p120
      %p122 = scmp.ne.s32.totalorder %s114, %s117
      %p123 = scmp.eq.s32.totalorder %s12, 0
      %p124 = por %p122, %p123
      %p125 = scmp.ne.s32.totalorder %s114, %s117
      %p126 = scmp.eq.s32.totalorder %s17, 1
      %p127 = por %p125, %p126
      %p128 = scmp.ne.s32.totalorder %s117, %s118
      %p129 = scmp.eq.s32.totalorder %s17, 0
      %p130 = por %p128, %p129
      %p131 = scmp.ne.s32.totalorder %s117, %s118
      %p132 = scmp.eq.s32.totalorder %s18, 1
      %p133 = por %p131, %p132
      %p135 = scmp.ne.s32.totalorder %s118, %s134
      %p136 = scmp.eq.s32.totalorder %s18, 0
      %p137 = por %p135, %p136
      %p138 = scmp.le.s32.totalorder 1, %s12
      %p139 = scmp.lt.s32.totalorder %s12, 3
      %p140 = pnand %p138, %p139
      %p141 = pneg %p140
      // Predicated region
      $region9: #{electra_sequence_summary.1} parent=5 // pred_check
        _
      $region10: #{electra_sequence_summary.1} parent=5 // pred_check_branch
        %143 = sbr.rel (%p140) target = $region12
      $region11: #{electra_sequence_summary.1} parent=5 // pred_region
        %s144 = ssub.s32 %s12, 1
        // Predicated region
        $region13: #{electra_sequence_summary.1} parent=11 // pred_check
          %p145 = pneg %p50
        $region14: #{electra_sequence_summary.1} parent=11 // pred_check_branch
          %147 = sbr.rel (%p145) target = $region16
        $region15: #{electra_sequence_summary.1} parent=11 // pred_region
          %p148 = scmp.lt.s32.totalorder %s22, 0
          %s149 = scalar_select %p148, %s22, 0
          %s150 = smul.addr %s149, 2
          %s151 = smul.addr %s150, 8
          %s152 = scalar_lea.vmem %s0, %s151
        $region16: #{electra_sequence_summary.1} parent=11 // pred_fallthru
          _
      $region12: #{electra_sequence_summary.1} parent=5 // pred_fallthru
        _
      %p153 = scmp.lt.s32.totalorder %s12, 2
      // Predicated region
      $region17: #{electra_sequence_summary.1} parent=5 // pred_check
        %p154 = pneg %p153
      $region18: #{electra_sequence_summary.1} parent=5 // pred_check_branch
        %156 = sbr.rel (%p154) target = $region20
      $region19: #{electra_sequence_summary.1} parent=5 // pred_region
        // Predicated region
        $region21: #{electra_sequence_summary.1} parent=19 // pred_check
          %p157 = pneg %p70
        $region22: #{electra_sequence_summary.1} parent=19 // pred_check_branch
          %159 = sbr.rel (%p157) target = $region24
        $region23: #{electra_sequence_summary.1} parent=19 // pred_region
          %s160 = sand.u32 %s60, 1
          %s161 = scalar_lea.sflag [#allocation3], %s160
          %s162 = sand.u32 %s60, 1
          %s163 = smul.addr %s162, 256
          %s164 = scalar_lea.vmem [#allocation2], %s163
          %s166 = ssub.s32 4096, 4096
          %167 = vsyncadd %s161, %s166
          %s168 = smul.addr %s19, 128
          %s169 = scalar_lea.hbm %s1, %s168
          %s170 = sshll.u32 %s164, 4
          %s171 = int_to_ptr.vmem [resolvable:$true] %s170
          %176 = dma.hbm_to_vmem [thread:$0]  %s169, 4096, %s171, %s161, 256, 128, 8
        $region24: #{electra_sequence_summary.1} parent=19 // pred_fallthru
          _
        // Predicated region
        $region25: #{electra_sequence_summary.1} parent=19 // pred_check
          %p177 = pneg %p96
        $region26: #{electra_sequence_summary.1} parent=19 // pred_check_branch
          %179 = sbr.rel (%p177) target = $region28
        $region27: #{electra_sequence_summary.1} parent=19 // pred_region
          %p180 = scmp.lt.s32.totalorder %s19, 1
          %s181 = scalar_select %p180, %s19, 1
          %s182 = scalar_lea.vmem %s2, %s181
        $region28: #{electra_sequence_summary.1} parent=19 // pred_fallthru
          _
      $region20: #{electra_sequence_summary.1} parent=5 // pred_fallthru
        _
      %p183 = scmp.le.s32.totalorder 1, %s12
      %p184 = scmp.lt.s32.totalorder %s12, 3
      %p185 = pnand %p183, %p184
      %p186 = pneg %p185
      // Predicated region
      $region29: #{electra_sequence_summary.1} parent=5 // pred_check
        _
      $region30: #{electra_sequence_summary.1} parent=5 // pred_check_branch
        %188 = sbr.rel (%p185) target = $region32
      $region31: #{electra_sequence_summary.1} parent=5 // pred_region
        %s189 = ssub.s32 %s12, 1
        %s190 = sand.u32 %s63, 1
        %s191 = scalar_lea.sflag [#allocation3], %s190
        %s192 = sand.u32 %s63, 1
        %s193 = smul.addr %s192, 256
        %s194 = scalar_lea.vmem [#allocation2], %s193
        // Predicated region
        $region33: #{electra_sequence_summary.1} parent=31 // pred_check
          %p195 = pneg %p76
        $region34: #{electra_sequence_summary.1} parent=31 // pred_check_branch
          %197 = sbr.rel (%p195) target = $region36
        $region35: #{electra_sequence_summary.1} parent=31 // pred_region
          %198 = dma.done %s191, 4096
        $region36: #{electra_sequence_summary.1} parent=31 // pred_fallthru
          _
        %p199 = scmp.lt.s32.totalorder %s22, 0
        %s200 = scalar_select %p199, %s22, 0
        %s201 = smul.addr %s200, 2
        %s202 = smul.addr %s201, 8
        %s203 = scalar_lea.vmem %s0, %s202
        %p204 = pneg %p50
        %p205 = pneg %p47
        %s206 = sand.u32 %s63, 1
        %s207 = scalar_lea.sflag [#allocation3], %s206
        %s208 = sand.u32 %s63, 1
        %s209 = smul.addr %s208, 256
        %s210 = scalar_lea.vmem [#allocation2], %s209
        %p211 = pneg %p76
        %p212 = pneg %p73
        %p213 = scmp.lt.s32.totalorder %s21, 1
        %s214 = scalar_select %p213, %s21, 1
        %s215 = scalar_lea.vmem %s2, %s214
        %p216 = pneg %p102
        %p217 = pneg %p99
        %p218 = pneg %p130
        %p219 = pneg %p127
        %p220 = scmp.lt.s32.totalorder %s22, 0
        %s221 = scalar_select %p220, %s22, 0
        %p222 = scmp.lt.s32.totalorder %s21, 1
        %s223 = scalar_select %p222, %s21, 1
        %s224 = smul.addr %s221, 2
        %s225 = sadd.s32 %s223, %s224
        %s226 = smul.addr %s225, 8
        %s227 = scalar_lea.vmem %s3, %s226
        %p228 = scmp.lt.s32.totalorder %s22, 0
        %s229 = scalar_select %p228, %s22, 0
        %s230 = smul.addr %s229, 2
        %s231 = smul.addr %s230, 8
        %s232 = scalar_lea.vmem %s0, %s231
        %p233 = scmp.lt.s32.totalorder %s21, 1
        %s234 = scalar_select %p233, %s21, 1
        %s235 = scalar_lea.vmem %s2, %s234
        %p236 = scmp.lt.s32.totalorder %s22, 0
        %s237 = scalar_select %p236, %s22, 0
        %p238 = scmp.lt.s32.totalorder %s21, 1
        %s239 = scalar_select %p238, %s21, 1
        %s240 = smul.addr %s237, 2
        %s241 = sadd.s32 %s239, %s240
        %s242 = smul.addr %s241, 8
        %s243 = scalar_lea.vmem %s3, %s242
        %v244 = vld [vmem:[%s232] sm:$0xff]
        %v245 = vld [vmem:[%s232 + $0x8] sm:$0xff]
        %v246 = vld [vmem:[%s194] sm:$0xff]
        %v247 = vld [vmem:[%s194 + $0x8] sm:$0xff]
        %v248 = vld [vmem:[%s194 + $0x10] sm:$0xff]
        %v249 = vld [vmem:[%s194 + $0x18] sm:$0xff]
        %v250 = vld [vmem:[%s194 + $0x20] sm:$0xff]
        %v251 = vld [vmem:[%s194 + $0x28] sm:$0xff]
        %v252 = vld [vmem:[%s194 + $0x30] sm:$0xff]
        %v253 = vld [vmem:[%s194 + $0x38] sm:$0xff]
        %v254 = vld [vmem:[%s194 + $0x40] sm:$0xff]
        %v255 = vld [vmem:[%s194 + $0x48] sm:$0xff]
        %v256 = vld [vmem:[%s194 + $0x50] sm:$0xff]
        %v257 = vld [vmem:[%s194 + $0x58] sm:$0xff]
        %v258 = vld [vmem:[%s194 + $0x60] sm:$0xff]
        %v259 = vld [vmem:[%s194 + $0x68] sm:$0xff]
        %v260 = vld [vmem:[%s194 + $0x70] sm:$0xff]
        %v261 = vld [vmem:[%s194 + $0x78] sm:$0xff]
        %v262 = vld [vmem:[%s194 + $0x80] sm:$0xff]
        %v263 = vld [vmem:[%s194 + $0x88] sm:$0xff]
        %v264 = vld [vmem:[%s194 + $0x90] sm:$0xff]
        %v265 = vld [vmem:[%s194 + $0x98] sm:$0xff]
        %v266 = vld [vmem:[%s194 + $0xa0] sm:$0xff]
        %v267 = vld [vmem:[%s194 + $0xa8] sm:$0xff]
        %v268 = vld [vmem:[%s194 + $0xb0] sm:$0xff]
        %v269 = vld [vmem:[%s194 + $0xb8] sm:$0xff]
        %v270 = vld [vmem:[%s194 + $0xc0] sm:$0xff]
        %v271 = vld [vmem:[%s194 + $0xc8] sm:$0xff]
        %v272 = vld [vmem:[%s194 + $0xd0] sm:$0xff]
        %v273 = vld [vmem:[%s194 + $0xd8] sm:$0xff]
        %v274 = vld [vmem:[%s194 + $0xe0] sm:$0xff]
        %v275 = vld [vmem:[%s194 + $0xe8] sm:$0xff]
        %v276 = vld [vmem:[%s194 + $0xf0] sm:$0xff]
        %v277 = vld [vmem:[%s194 + $0xf8] sm:$0xff]
        %v278 = vld [vmem:[%s235] sm:$0x1]
        %v280 = vlaneseq
        %v281 = vshrl.u32 %v280, 7
        %v282 = vsub.s32 0, %v281
        %v283 = vrot.slane %v278, %v282
        %285 = vmatprep.subr.mxu0 0.0
        %286 = vmatpush1.msra.mxu0 %v246
        %287 = vmatprep.subr.mxu0 0.0
        %288 = vmatpush1.msra.mxu0 %v247
        %289 = vmatprep.subr.mxu0 0.0
        %290 = vmatpush1.msra.mxu0 %v248
        %291 = vmatprep.subr.mxu0 0.0
        %292 = vmatpush1.msra.mxu0 %v249
        %293 = vmatprep.subr.mxu0 0.0
        %294 = vmatpush1.msra.mxu0 %v250
        %295 = vmatprep.subr.mxu0 0.0
        %296 = vmatpush1.msra.mxu0 %v251
        %297 = vmatprep.subr.mxu0 0.0
        %298 = vmatpush1.msra.mxu0 %v252
        %299 = vmatprep.subr.mxu0 0.0
        %300 = vmatpush1.msra.mxu0 %v253
        %301 = vmatprep.subr.mxu0 0.0
        %302 = vmatpush1.msra.mxu0 %v254
        %303 = vmatprep.subr.mxu0 0.0
        %304 = vmatpush1.msra.mxu0 %v255
        %305 = vmatprep.subr.mxu0 0.0
        %306 = vmatpush1.msra.mxu0 %v256
        %307 = vmatprep.subr.mxu0 0.0
        %308 = vmatpush1.msra.mxu0 %v257
        %309 = vmatprep.subr.mxu0 0.0
        %310 = vmatpush1.msra.mxu0 %v258
        %311 = vmatprep.subr.mxu0 0.0
        %312 = vmatpush1.msra.mxu0 %v259
        %313 = vmatprep.subr.mxu0 0.0
        %314 = vmatpush1.msra.mxu0 %v260
        %315 = vmatprep.subr.mxu0 0.0
        %316 = vmatpush1.msra.mxu0 %v261
        %317 = vmatprep.subr.mxu0 0.0
        %318 = vmatpush1.msra.mxu0 %v262
        %319 = vmatprep.subr.mxu0 0.0
        %320 = vmatpush1.msra.mxu0 %v263
        %321 = vmatprep.subr.mxu0 0.0
        %322 = vmatpush1.msra.mxu0 %v264
        %323 = vmatprep.subr.mxu0 0.0
        %324 = vmatpush1.msra.mxu0 %v265
        %325 = vmatprep.subr.mxu0 0.0
        %326 = vmatpush1.msra.mxu0 %v266
        %327 = vmatprep.subr.mxu0 0.0
        %328 = vmatpush1.msra.mxu0 %v267
        %329 = vmatprep.subr.mxu0 0.0
        %330 = vmatpush1.msra.mxu0 %v268
        %331 = vmatprep.subr.mxu0 0.0
        %332 = vmatpush1.msra.mxu0 %v269
        %333 = vmatprep.subr.mxu0 0.0
        %334 = vmatpush1.msra.mxu0 %v270
        %335 = vmatprep.subr.mxu0 0.0
        %336 = vmatpush1.msra.mxu0 %v271
        %337 = vmatprep.subr.mxu0 0.0
        %338 = vmatpush1.msra.mxu0 %v272
        %339 = vmatprep.subr.mxu0 0.0
        %340 = vmatpush1.msra.mxu0 %v273
        %341 = vmatprep.subr.mxu0 0.0
        %342 = vmatpush1.msra.mxu0 %v274
        %343 = vmatprep.subr.mxu0 0.0
        %344 = vmatpush1.msra.mxu0 %v275
        %345 = vmatprep.subr.mxu0 0.0
        %346 = vmatpush1.msra.mxu0 %v276
        %347 = vmatprep.subr.mxu0 0.0
        %348 = vmatpush1.msra.mxu0 %v277
        %349 = vmatprep.mubr.f32.mxu0 %v245
        %350 = vmatmul.mubr.f32.gmra.mrb[0].mxu0 %v244
        %v351 = vpop.f32.mrb[0].mxu0
        %v352 = vadd.f32 %v283, %v351
        %v353 = vpop.f32.mrb[0].mxu0
        %354 = vdwg.mxu0
        %v355 = vmul.f32 %v352, 0.5
        %v356 = vmul.f32 %v352, 0.70710677
        %v357 = verf.f32.pop %v356
        %v358 = vadd.f32 %v357, 1.0
        %v359 = vmul.f32 %v355, %v358
        %360 = vst [vmem:[%s243] sm:$0xff] %v359
        %p361 = scmp.lt.s32.totalorder %s22, 0
        %s362 = scalar_select %p361, %s22, 0
        %p363 = scmp.lt.s32.totalorder %s21, 1
        %s364 = scalar_select %p363, %s21, 1
        %s365 = smul.addr %s362, 2
        %s366 = sadd.s32 %s364, %s365
        %s367 = smul.addr %s366, 8
        %s368 = scalar_lea.vmem %s3, %s367
        // Predicated region
        $region37: #{electra_sequence_summary.1} parent=31 // pred_check
          %p369 = pneg %p127
        $region38: #{electra_sequence_summary.1} parent=31 // pred_check_branch
          %371 = sbr.rel (%p369) target = $region40
        $region39: #{electra_sequence_summary.1} parent=31 // pred_region
          _
        $region40: #{electra_sequence_summary.1} parent=31 // pred_fallthru
          _
      $region32: #{electra_sequence_summary.1} parent=5 // pred_fallthru
        _
      %p372 = scmp.le.s32.totalorder 2, %s12
      // Predicated region
      $region41: #{electra_sequence_summary.1} parent=5 // pred_check
        %p373 = pneg %p372
      $region42: #{electra_sequence_summary.1} parent=5 // pred_check_branch
        %375 = sbr.rel (%p373) target = $region44
      $region43: #{electra_sequence_summary.1} parent=5 // pred_region
        %s376 = ssub.s32 %s12, 2
        // Predicated region
        $region45: #{electra_sequence_summary.1} parent=43 // pred_check
          %p377 = pneg %p133
        $region46: #{electra_sequence_summary.1} parent=43 // pred_check_branch
          %379 = sbr.rel (%p377) target = $region48
        $region47: #{electra_sequence_summary.1} parent=43 // pred_region
          %p380 = scmp.lt.s32.totalorder %s24, 0
          %s381 = scalar_select %p380, %s24, 0
          %p382 = scmp.lt.s32.totalorder %s23, 1
          %s383 = scalar_select %p382, %s23, 1
          %s384 = smul.addr %s381, 2
          %s385 = sadd.s32 %s383, %s384
          %s386 = smul.addr %s385, 8
          %s387 = scalar_lea.vmem %s3, %s386
        $region48: #{electra_sequence_summary.1} parent=43 // pred_fallthru
          _
      $region44: #{electra_sequence_summary.1} parent=5 // pred_fallthru
        _
    $region6: #{electra_sequence_summary.1} parent=1 // loop_footer
      %s16 = sadd.s32 1, %s12
    $region7: #{electra_sequence_summary.1} parent=1 // loop_footer_branch
      %11 = sbr.rel target = $region3
    $region8: #{electra_sequence_summary.1} parent=1 // loop_exit
      _
    %388 = vsyncpa [#allocation3], 1
    %s389 = scalar_lea.sflag [#allocation3], 1
    %390 = vsyncpa %s389, 1

</llo_original>
